<compile_context>
chip_gen: v7x
topology: tpu7x:2x2x1
jax: 0.10.0
libtpu: 0.0.40
codegen_flags: <defaults>
</compile_context>

<pallas_src>
import jax
import jax.numpy as jnp
from jax.experimental import pallas as pl
from jax.experimental.pallas import tpu as pltpu


def _round_up(x, m):
    return -(-x // m) * m


def _bcl_kernel(x_ref, w_ref, b_ref, o_ref):
    # x_ref : (Bt, 1, S)   VMEM  padded input rows (lane axis = S)
    # w_ref : (Ct, 1)      VMEM  row-sums of LC_Weight for this channel tile
    # b_ref : (1,)         SMEM  sum of LC_Bias
    # o_ref : (Bt, Ct, S)  VMEM
    x = x_ref[...]                         # (Bt, 1, S)
    w = w_ref[...]                         # (Ct, 1)
    o_ref[...] = x * w[None, :, :] + b_ref[0]


def _tpu_budget():
    """(per-TensorCore VMEM bytes, chip-has-two-TensorCores), with a safe fallback."""
    vmem = 128 << 20
    try:
        info = pltpu.get_tpu_info()
        vmem = int(getattr(info, "vmem_capacity_bytes", vmem))
    except Exception:   # not a TPU / API drift -> conservative defaults
        pass
    # v7x exposes 64 MiB per TensorCore and has 2 TCs; v5e/v6e have 128 MiB and 1 TC.
    return vmem, vmem <= (64 << 20)


def _choose_tiles(B, C, S, vmem_cap, two_tc):
    """Pick (Bt, Ct) so each output block is a few MiB and v7x gets >= 2 grid steps."""
    lane_S = _round_up(S, 128)
    row_bytes = lane_S * 4                # one channel row of one batch element, in VMEM
    C8 = _round_up(C, 8)

    # Bigger blocks on single-TC chips (amortize ~0.35 us / grid step); cap by VMEM headroom.
    target = (8 << 20) if two_tc else (16 << 20)
    target = max(8 * row_bytes, min(target, vmem_cap // 6))
    max_rows = max(8, target // row_bytes)

    if C8 <= max_rows:
        Ct = C                                      # full channel extent (block dim == full dim)
        Bt = max(1, min(B, max_rows // C8))
    else:
        Ct = max(8, (max_rows // 8) * 8)            # multiple of 8; ragged last C block
        Bt = 1

    if two_tc and (-(-B // Bt)) * (-(-C // Ct)) < 2:
        # v7x megacore: ensure >= 2 'parallel' grid steps when the problem allows it.
        if B >= 2:
            Bt = -(-B // 2)
        elif C > 8:
            Ct = _round_up(-(-C // 2), 8)
    return Bt, Ct, lane_S


def block_connected_forward(x, weight, bias, kernel_size, *,
                            force_pallas=False, tile_override=None):
    """Forward of block_connected_layer.

    x      : (B, d_model, 1) float32
    weight : (C, d_model, 1) float32   (LC_Weight), C == d_model
    bias   : (C, 1) float32            (LC_Bias)
    returns: (B, C, d_model + 2*pad, 1), pad = d_model % kernel_size
    """
    B, d_model, _ = x.shape
    C = weight.shape[0]
    # The torch forward (for C > 1) only broadcasts when out_channels == d_model.
    assert C == d_model, "LC_Bias broadcasting requires out_channels == d_model"

    pad = d_model % kernel_size
    S = d_model + 2 * pad                 # zero_padding applied twice (block + LC layer)
    assert S > 1, "nn.Unfold branch (S == 1) not implemented"

    f32 = jnp.float32
    x2 = x[..., 0].astype(f32)                                              # (B, d_model)
    # Hoisted reductions: out[b,c,s] = (sum_d W[c,d]) * x_pad[b,s] + sum_d bias[d]
    w_rowsum = jnp.sum(weight[..., 0].astype(f32), axis=1, keepdims=True)   # (C, 1)
    b_sum = jnp.sum(bias.astype(f32)).reshape(1)                            # (1,)

    # Small-problem fast path: a fused XLA broadcast-mul-add beats kernel launch +
    # per-step overhead when the useful output is below ~0.5 MiB.
    if not force_pallas and B * C * S * 4 < (1 << 19):
        x_pad = jnp.pad(x2, ((0, 0), (0, S - d_model)))
        out = x_pad[:, None, :] * w_rowsum[None, :, :] + b_sum[0]
        return out[..., None]

    vmem_cap, two_tc = _tpu_budget()
    if tile_override is not None:
        Bt, Ct = tile_override            # Ct must be a multiple of 8 or equal to C
        lane_S = _round_up(S, 128)
    else:
        Bt, Ct, lane_S = _choose_tiles(B, C, S, vmem_cap, two_tc)
    n_b = -(-B // Bt)
    n_c = -(-C // Ct)

    # Only the module's own zero-padding is materialized; the kernel output keeps the
    # exact (B, C, S) extent -> no post-kernel slice, HBM writes == useful bytes.
    x_k = jnp.pad(x2, ((0, 0), (0, S - d_model))).reshape(B, 1, S)

    # Honest VMEM budget: double-buffered blocks at their padded VMEM layout + headroom.
    Ct_v = _round_up(Ct, 8)
    vmem_bytes = (2 * Bt * Ct_v * lane_S * 4        # output block (double-buffered)
                  + 2 * Bt * 8 * lane_S * 4         # x block (middle dim 1 -> 8 sublanes)
                  + 2 * Ct_v * 128 * 4              # w block (last dim 1 -> 128 lanes)
                  + (2 << 20))                      # Mosaic internal scratch headroom
    vmem_limit = int(min(max(vmem_bytes, 4 << 20),
                         (56 << 20) if two_tc else (100 << 20)))

    out = pl.pallas_call(
        _bcl_kernel,
        out_shape=jax.ShapeDtypeStruct((B, C, S), f32),
        grid_spec=pltpu.PrefetchScalarGridSpec(
            num_scalar_prefetch=0,
            grid=(n_b, n_c),
            in_specs=[
                pl.BlockSpec((Bt, 1, S), lambda b, c: (b, 0, 0)),
                pl.BlockSpec((Ct, 1), lambda b, c: (c, 0)),
                pl.BlockSpec(memory_space=pltpu.MemorySpace.SMEM),
            ],
            out_specs=pl.BlockSpec((Bt, Ct, S), lambda b, c: (b, c, 0)),
        ),
        compiler_params=pltpu.CompilerParams(
            dimension_semantics=("parallel", "parallel"),
            vmem_limit_bytes=vmem_limit,
        ),
    )(x_k, w_rowsum, b_sum)

    # Exact-extent output: only the free trailing-singleton reshape remains.
    return out[..., None]                                                   # (B, C, S, 1)


def _torch_reference(x, weight, bias, kernel_size):
    """Literal jnp transcription of the PyTorch forward (for verification)."""
    B, d_model, _ = x.shape
    C = weight.shape[0]
    pad = d_model % kernel_size
    x = jnp.pad(x, ((0, 0), (0, pad), (0, 0)))    # block_connected_layer.padding
    x = jnp.pad(x, ((0, 0), (0, pad), (0, 0)))    # locally_connected_layer.padding
    xe = jnp.transpose(x, (0, 2, 1))[:, None, :, :]                   # (B, 1, 1, S)
    xe = jnp.broadcast_to(xe, (B, C) + xe.shape[2:])                  # (B, C, 1, S)
    y = xe * weight + bias                                            # (B, C, D, S)
    # `if x.size(-1) == 1` (unfold) branch skipped: last dim S != 1
    y = y.sum(-2)[:, :, None, :]                                      # (B, C, 1, S)
    return jnp.transpose(y, (0, 1, 3, 2))                             # (B, C, S, 1)


def _run_case(key, B, d_model, kernel_size, **fwd_kwargs):
    kx, kw, kb = jax.random.split(key, 3)
    out_channels = d_model            # required by the LC_Bias broadcast
    x = jax.random.normal(kx, (B, d_model, 1), dtype=jnp.float32)
    weight = jax.random.normal(kw, (out_channels, d_model, 1), dtype=jnp.float32)
    bias = jax.random.normal(kb, (out_channels, 1), dtype=jnp.float32)

    out = jax.block_until_ready(
        block_connected_forward(x, weight, bias, kernel_size, **fwd_kwargs))
    ref = _torch_reference(x, weight, bias, kernel_size)
    S = d_model + 2 * (d_model % kernel_size)
    assert out.shape == ref.shape == (B, out_channels, S, 1), (out.shape, ref.shape)
    err = float(jnp.max(jnp.abs(out - ref)))
    assert jnp.allclose(out, ref, rtol=1e-3, atol=1e-3), err


if __name__ == "__main__":
    key = jax.random.PRNGKey(0)
    k1, k2, k3, k4 = jax.random.split(key, 4)

    # 1) Small shape through the Pallas path (auto-tiled; pad=4, S=24).
    _run_case(k1, B=2, d_model=16, kernel_size=6, force_pallas=True)
    # 2) Odd shapes with forced multi-block tiling: exercises ragged last B and C blocks.
    _run_case(k2, B=3, d_model=13, kernel_size=5, force_pallas=True, tile_override=(2, 8))
    # 3) Larger case through the default auto-tiled Pallas path (S=264 > 128 lanes).
    _run_case(k3, B=2, d_model=256, kernel_size=7, force_pallas=True)
    # 4) Small-problem fast path (no pallas_call), same semantics.
    _run_case(k4, B=2, d_model=16, kernel_size=6)

    print("KERNEL_OK")
</pallas_src>

<mosaic_0001>
module attributes {stable_mosaic.version = 11 : i64} {
  func.func @_bcl_kernel(%arg0: i32, %arg1: i32, %arg2: memref<2x1x24xf32, #tpu.memory_space<vmem>>, %arg3: memref<16x1xf32, #tpu.memory_space<vmem>>, %arg4: memref<1xf32, #tpu.memory_space<smem>>, %arg5: memref<2x16x24xf32, #tpu.memory_space<vmem>>) attributes {dimension_semantics = [#tpu.dimension_semantics<parallel>, #tpu.dimension_semantics<parallel>], iteration_bounds = array<i64: 1, 1>, scalar_prefetch = 0 : i64, scratch_operands = 0 : i64, tpu.core_type = #tpu.core_type<tc>, window_params = [{transform_indices = @transform_0, window_bounds = array<i64: 2, 1, 24>}, {transform_indices = @transform_1, window_bounds = array<i64: 16, 1>}, {transform_indices = @transform_2, window_bounds = array<i64: 1>}, {transform_indices = @transform_3, window_bounds = array<i64: 2, 16, 24>}]} {
    %c0 = arith.constant 0 : index
    %c0_0 = arith.constant 0 : index
    %c0_1 = arith.constant 0 : index
    %0 = vector.load %arg2[%c0, %c0_0, %c0_1] : memref<2x1x24xf32, #tpu.memory_space<vmem>>, vector<2x1x24xf32>
    %c0_2 = arith.constant 0 : index
    %c0_3 = arith.constant 0 : index
    %1 = vector.load %arg3[%c0_2, %c0_3] : memref<16x1xf32, #tpu.memory_space<vmem>>, vector<16x1xf32>
    %2 = vector.shape_cast %1 : vector<16x1xf32> to vector<1x16x1xf32>
    %3 = vector.broadcast %0 : vector<2x1x24xf32> to vector<2x16x24xf32>
    %4 = vector.broadcast %2 : vector<1x16x1xf32> to vector<2x16x24xf32>
    %5 = arith.mulf %3, %4 : vector<2x16x24xf32>
    %c0_4 = arith.constant 0 : index
    %6 = memref.load %arg4[%c0_4] : memref<1xf32, #tpu.memory_space<smem>>
    %7 = vector.broadcast %6 : f32 to vector<2x16x24xf32>
    %8 = arith.addf %5, %7 : vector<2x16x24xf32>
    %c0_5 = arith.constant 0 : index
    %c0_6 = arith.constant 0 : index
    %c0_7 = arith.constant 0 : index
    %9 = vector.load %arg5[%c0_5, %c0_6, %c0_7] : memref<2x16x24xf32, #tpu.memory_space<vmem>>, vector<2x16x24xf32>
    tpu.vector_store %arg5[%c0_5, %c0_6, %c0_7], %8 {strides = array<i32>} : memref<2x16x24xf32, #tpu.memory_space<vmem>>, vector<2x16x24xf32>,
    return
  }
  func.func @transform_0(%arg0: i32, %arg1: i32) -> (i32, i32, i32) {
    %c0_i32 = arith.constant 0 : i32
    %c0_i32_0 = arith.constant 0 : i32
    %c0_i32_1 = arith.constant 0 : i32
    return %arg0, %c0_i32, %c0_i32_0 : i32, i32, i32
  }
  func.func @transform_1(%arg0: i32, %arg1: i32) -> (i32, i32) {
    %c0_i32 = arith.constant 0 : i32
    %c0_i32_0 = arith.constant 0 : i32
    return %arg1, %c0_i32 : i32, i32
  }
  func.func @transform_2(%arg0: i32, %arg1: i32) -> i32 {
    %c0_i32 = arith.constant 0 : i32
    %c0_i32_0 = arith.constant 0 : i32
    return %c0_i32 : i32
  }
  func.func @transform_3(%arg0: i32, %arg1: i32) -> (i32, i32, i32) {
    %c0_i32 = arith.constant 0 : i32
    %c0_i32_0 = arith.constant 0 : i32
    return %arg0, %arg1, %c0_i32 : i32, i32, i32
  }
}

</mosaic_0001>

<llo_original>
// kernel: tpu_custom_call.1
$region0: #{tpu_custom_call.1}
  #allocation0 [shape = 'u32[]', space=smem, size = 0x4, offset = 0x4, fixed_abs, tag = 'smem constant byte address 0x4 - core index']
  #allocation1 [shape = 'u32[144,128]{1,0:T(1,128)}', space=vmem, size = 0x12000, scoped, tag = 'internal scratch']
  #allocation2 [shape = 'f32[1]{0:T(128)S(6)}', space=smem, size = 0x200, scoped, tag = 'scoped memory for tpu_custom_call.1']
  %s0 = inlined_call_operand.vmem [shape: f32[2,1,24], index: 0, kind: input, shape index: {}]
  %s1 = inlined_call_operand.vmem [shape: f32[16,1], index: 1, kind: input, shape index: {}]
  %s2 = inlined_call_operand.<no memory space> [shape: f32[1], index: 2, kind: input, shape index: {}]
  %s3 = inlined_call_operand.hbm [shape: f32[2,16,24], index: 3, kind: output, shape index: {}]
  %s4 = sld [smem:[#allocation0]]
  $region22: #{tpu_custom_call.1} parent=0
    _
  %s6 = ssub.s32 1, %s4
  %s7 = scalar_select 0, %s6, %s4
  %8 = sst [smem:[#allocation2]] %s2
  $region1: #{tpu_custom_call.1} parent=0
    #allocation3 [shape = 'u8[16384]{0}', space=vmem, size = 0x4000, scoped, tag = 'output window, operand 0, single buffered']
    #allocation4 [shape = 's32[1]{0}', space=sflag, size = 0x4, scoped, tag = 'scoped memory for tpu_custom_call.1']
    %9 = vsyncpa [#allocation4], 0
    // Predicated region
    $region2: #{tpu_custom_call.1} parent=1 // pred_check
      _
    $region3: #{tpu_custom_call.1} parent=1 // pred_check_branch
      %11 = sbr.rel (0) target = $region5
    $region4: #{tpu_custom_call.1} parent=1 // pred_region
      _
    $region5: #{tpu_custom_call.1} parent=1 // pred_fallthru
      _
    // Predicated region
    $region6: #{tpu_custom_call.1} parent=1 // pred_check
      _
    $region7: #{tpu_custom_call.1} parent=1 // pred_check_branch
      %13 = sbr.rel (0) target = $region9
    $region8: #{tpu_custom_call.1} parent=1 // pred_region
      _
    $region9: #{tpu_custom_call.1} parent=1 // pred_fallthru
      _
    // Predicated region
    $region10: #{tpu_custom_call.1} parent=1 // pred_check
      _
    $region11: #{tpu_custom_call.1} parent=1 // pred_check_branch
      %15 = sbr.rel (0) target = $region13
    $region12: #{tpu_custom_call.1} parent=1 // pred_region
      _
    $region13: #{tpu_custom_call.1} parent=1 // pred_fallthru
      _
    %v16 = vld [vmem:[%s0] sm:$0x1]
    %v17 = vld [vmem:[%s0 + $0x1] sm:$0x1]
    %v18 = vld [vmem:[%s1] sm:$0xff]
    %v19 = vld [vmem:[%s1 + $0x8] sm:$0xff]
    %v22 = vlaneseq
    %v23 = vshrl.u32 %v22, 7
    %v24 = vsub.s32 0, %v23
    %v25 = vrot.slane %v16, %v24
    %v26 = vlaneseq
    %v27 = vshrl.u32 %v26, 7
    %v28 = vsub.s32 0, %v27
    %v29 = vrot.slane %v17, %v28
    %33 = vset.pattern.permute.xlu0 0
    %34 = vperm.xlu0 %33, %v18
    %v35 = vpop.permute.xlu0 %34
    %38 = vset.pattern.permute.xlu0 0
    %39 = vperm.xlu0 %38, %v19
    %v40 = vpop.permute.xlu0 %39
    %v42 = vmul.f32 %v25, %v35
    %v43 = vmul.f32 %v25, %v40
    %v44 = vmul.f32 %v29, %v35
    %v45 = vmul.f32 %v29, %v40
    %s46 = sld [smem:[#allocation2]]
    %v47 = vstv %s46
    %v48 = vadd.f32 %v42, %v47
    %v49 = vadd.f32 %v43, %v47
    %v50 = vadd.f32 %v44, %v47
    %v51 = vadd.f32 %v45, %v47
    %vm52 = vcmask 195584
    %53 = vst.msk [vmem:[#allocation3] sm:$0xff] %vm52, %v48
    %54 = vst.msk [vmem:[#allocation3 + $0x8] sm:$0xff] %vm52, %v49
    %55 = vst.msk [vmem:[#allocation3 + $0x10] sm:$0xff] %vm52, %v50
    %56 = vst.msk [vmem:[#allocation3 + $0x18] sm:$0xff] %vm52, %v51
    // Predicated region
    $region14: #{tpu_custom_call.1} parent=1 // pred_check
      _
    $region15: #{tpu_custom_call.1} parent=1 // pred_check_branch
      %58 = sbr.rel (0) target = $region17
    $region16: #{tpu_custom_call.1} parent=1 // pred_region
      %s60 = ssub.s32 512, 512
      %61 = vsyncadd [#allocation4], %s60
      %s62 = sshll.u32 [#allocation3], 4
      %s63 = int_to_ptr.vmem [resolvable:$true] %s62
      %68 = dma.vmem_to_hbm [thread:$0]  %s63, 512, %s3, [#allocation4], 128, 128, 8
    $region17: #{tpu_custom_call.1} parent=1 // pred_fallthru
      _
    // Predicated region
    $region18: #{tpu_custom_call.1} parent=1 // pred_check
      _
    $region19: #{tpu_custom_call.1} parent=1 // pred_check_branch
      %70 = sbr.rel (0) target = $region21
    $region20: #{tpu_custom_call.1} parent=1 // pred_region
      %71 = dma.done [#allocation4], 512
    $region21: #{tpu_custom_call.1} parent=1 // pred_fallthru
      _
    %72 = vsyncpa [#allocation4], 1

</llo_original>
